<compile_context>
chip_gen: v7x
topology: tpu7x:2x2x1
jax: 0.10.0
libtpu: 0.0.40
codegen_flags: <defaults>
</compile_context>

<pallas_src>
import functools

import jax
import jax.numpy as jnp
from jax.experimental import pallas as pl
from jax.experimental.pallas import tpu as pltpu

_INV_SQRT2 = 0.7071067811865476
_SQRT_2_OVER_PI = 0.7978845608028654


def _gelu(x, use_tanh=False):
    if use_tanh:
        # tanh approximation routes the transcendental to the EUP slot
        # (useful on v5e small-channel layers); off by default for parity.
        return 0.5 * x * (1.0 + jnp.tanh(_SQRT_2_OVER_PI * (x + 0.044715 * x * x * x)))
    # nn.GELU() default: exact erf formulation, computed in f32.
    return 0.5 * x * (1.0 + jax.lax.erf(x * _INV_SQRT2))


def _round_up(x, m):
    return ((x + m - 1) // m) * m


def _tpu_defaults(kind):
    """Per-generation (tm, tk, vmem_limit_bytes, resident_weight_budget)."""
    if "v7" in kind:
        # 64 MiB VMEM, ~3.2 TB/s HBM, 2 TCs: tm up, tk down, tight VMEM cap.
        return 512, 512, 52 * 1024 * 1024, 20 * 1024 * 1024
    if "v6" in kind:
        # 128 MiB VMEM, ~1.4 TB/s HBM: large tm needed to be MXU-bound.
        return 1024, 1024, 100 * 1024 * 1024, 48 * 1024 * 1024
    # v5e / unknown: tm=256 already near the ~240 FLOP/byte crossover.
    return 256, 1024, 48 * 1024 * 1024, 40 * 1024 * 1024


def _mlp_kernel_resident(x_ref, w1_ref, b1_ref, w2_ref, b2_ref, o_ref, *,
                         compute_dtype, use_tanh_gelu):
    # gk == 1: full hidden dim per step, weights resident, no scratch.
    h = jnp.dot(x_ref[...], w1_ref[...], preferred_element_type=jnp.float32)
    h = _gelu(h + b1_ref[...], use_tanh_gelu)          # bias + GELU in f32
    # Dropout (eval mode) = identity.
    o = jnp.dot(h.astype(compute_dtype), w2_ref[...],
                preferred_element_type=jnp.float32)
    o_ref[...] = (o + b2_ref[...]).astype(o_ref.dtype)
    # Dropout (eval mode) = identity.


def _mlp_kernel_chunked(x_ref, w1_ref, b1_ref, w2_ref, b2_ref, o_ref, acc_ref, *,
                        compute_dtype, use_tanh_gelu):
    # gk >= 2: reduce over hidden chunks with an f32 VMEM accumulator.
    k = pl.program_id(1)
    nk = pl.num_programs(1)

    h = jnp.dot(x_ref[...], w1_ref[...], preferred_element_type=jnp.float32)
    h = _gelu(h + b1_ref[...], use_tanh_gelu)          # bias + GELU in f32
    # Dropout (eval mode) = identity.
    partial = jnp.dot(h.astype(compute_dtype), w2_ref[...],
                      preferred_element_type=jnp.float32)

    @pl.when(k == 0)
    def _():
        acc_ref[...] = partial                         # no zero-fill + add

    @pl.when(jnp.logical_and(k > 0, k < nk - 1))
    def _():
        acc_ref[...] += partial

    @pl.when(k == nk - 1)
    def _():
        # Fuse the final partial and the output bias into the store
        # (no extra accumulator read-modify-write on the last step).
        o_ref[...] = (acc_ref[...] + partial + b2_ref[...]).astype(o_ref.dtype)
        # Dropout (eval mode) = identity.


@functools.partial(jax.jit,
                   static_argnames=("tm", "tk", "compute_dtype",
                                    "use_tanh_gelu", "weights_resident"))
def mlp_forward(x, w1, b1, w2, b2, *, tm=None, tk=None,
                compute_dtype=jnp.bfloat16, use_tanh_gelu=False,
                weights_resident=None):
    """x: (B, N, C_in) -> (B, N, C_out).  Weights already transposed to (in, out)."""
    B, N, C_in = x.shape
    C_hid = w1.shape[1]
    C_out = w2.shape[1]
    M = B * N
    out_dtype = x.dtype
    cdt_size = jnp.dtype(compute_dtype).itemsize
    out_size = jnp.dtype(out_dtype).itemsize

    kind = ""
    try:
        kind = jax.devices()[0].device_kind.lower()
    except Exception:
        pass
    d_tm, d_tk, vmem_limit, weight_budget = _tpu_defaults(kind)
    if tm is None:
        tm = d_tm
    if tk is None:
        tk = d_tk

    # Row tile: never larger than the (8-aligned) token count.  No host-side
    # padding of x / slicing of out: grid uses cdiv and Pallas masks the
    # ragged last row tile.
    tm = min(tm, _round_up(M, 8))
    # v7x megacore: ensure the "parallel" M axis has >= 2 steps so both
    # TensorCores get work.
    if "v7" in kind and M >= 16:
        tm = min(tm, _round_up((M + 1) // 2, 8))

    # Hidden-dim tiling: keep the full bf16 weights resident (gk == 1) when
    # they fit the per-chip budget; otherwise bound tk and pad C_hid so it
    # divides (keeps the VMEM footprint predictable for any hidden size).
    w_bytes = (C_in * C_hid + C_hid * C_out) * cdt_size
    if weights_resident is None:
        weights_resident = w_bytes <= weight_budget
    if weights_resident:
        tk = C_hid
        C_hid_p = C_hid
        gk = 1
    else:
        tk = min(tk, _round_up(C_hid, 128))
        C_hid_p = _round_up(C_hid, tk)
        gk = C_hid_p // tk

    # Shrink tm if the estimated VMEM footprint would not fit the scoped limit.
    def footprint(tm_):
        f = 2 * tm_ * C_in * cdt_size            # x (double-buffered)
        f += 2 * C_in * tk * cdt_size            # W1 tiles
        f += 2 * tk * C_out * cdt_size           # W2 tiles
        f += 2 * (tk + C_out) * 4                # biases (f32)
        f += 2 * tm_ * C_out * out_size          # out tiles
        f += tm_ * tk * 4                        # f32 GELU intermediate
        if gk > 1:
            f += tm_ * C_out * 4                 # f32 accumulator scratch
        return f

    while tm > 128 and footprint(tm) > int(0.85 * vmem_limit):
        tm = max(128, tm // 2)

    gm = pl.cdiv(M, tm)

    # Operand prep: bf16 operands (MXU fast path), f32 biases.
    x2d = x.reshape(M, C_in).astype(compute_dtype)
    w1c = w1.astype(compute_dtype)
    w2c = w2.astype(compute_dtype)
    b1_2d = b1.reshape(1, C_hid).astype(jnp.float32)
    b2_2d = b2.reshape(1, C_out).astype(jnp.float32)
    if C_hid_p != C_hid:
        pad = C_hid_p - C_hid
        # Zero padding is exact: gelu(0) == 0 and the padded W2 rows are 0.
        w1c = jnp.pad(w1c, ((0, 0), (0, pad)))
        b1_2d = jnp.pad(b1_2d, ((0, 0), (0, pad)))
        w2c = jnp.pad(w2c, ((0, pad), (0, 0)))

    # Advisory cost estimate, including gm-fold weight re-streaming when gk>1.
    weight_stream = 1 if gk == 1 else gm
    cost = pl.CostEstimate(
        flops=2 * M * C_hid_p * (C_in + C_out),
        transcendentals=M * C_hid_p,
        bytes_accessed=(M * C_in * cdt_size
                        + weight_stream * (C_in * C_hid_p + C_hid_p * C_out) * cdt_size
                        + weight_stream * (C_hid_p + C_out) * 4
                        + M * C_out * out_size),
    )

    compiler_params = pltpu.CompilerParams(
        dimension_semantics=(("parallel",) if gk == 1
                             else ("parallel", "arbitrary")),
        vmem_limit_bytes=vmem_limit,
    )

    if gk == 1:
        # Weights-resident path: constant weight index_maps -> DMA'd once.
        grid_spec = pltpu.PrefetchScalarGridSpec(
            num_scalar_prefetch=0,
            grid=(gm,),
            in_specs=[
                pl.BlockSpec((tm, C_in), lambda i: (i, 0)),        # x row tile
                pl.BlockSpec((C_in, C_hid_p), lambda i: (0, 0)),   # W1 (resident)
                pl.BlockSpec((1, C_hid_p), lambda i: (0, 0)),      # b1 (resident)
                pl.BlockSpec((C_hid_p, C_out), lambda i: (0, 0)),  # W2 (resident)
                pl.BlockSpec((1, C_out), lambda i: (0, 0)),        # b2 (resident)
            ],
            out_specs=pl.BlockSpec((tm, C_out), lambda i: (i, 0)),
        )
        kernel = functools.partial(_mlp_kernel_resident,
                                   compute_dtype=compute_dtype,
                                   use_tanh_gelu=use_tanh_gelu)
    else:
        # Chunked-hidden path: reduction axis last, f32 VMEM accumulator.
        grid_spec = pltpu.PrefetchScalarGridSpec(
            num_scalar_prefetch=0,
            grid=(gm, gk),
            in_specs=[
                pl.BlockSpec((tm, C_in), lambda i, k: (i, 0)),     # x row tile
                pl.BlockSpec((C_in, tk), lambda i, k: (0, k)),     # W1 hidden chunk
                pl.BlockSpec((1, tk), lambda i, k: (0, k)),        # b1 hidden chunk
                pl.BlockSpec((tk, C_out), lambda i, k: (k, 0)),    # W2 hidden chunk
                pl.BlockSpec((1, C_out), lambda i, k: (0, 0)),     # b2 (constant)
            ],
            out_specs=pl.BlockSpec((tm, C_out), lambda i, k: (i, 0)),
            scratch_shapes=[pltpu.VMEM((tm, C_out), jnp.float32)],
        )
        kernel = functools.partial(_mlp_kernel_chunked,
                                   compute_dtype=compute_dtype,
                                   use_tanh_gelu=use_tanh_gelu)

    out2d = pl.pallas_call(
        kernel,
        out_shape=jax.ShapeDtypeStruct((M, C_out), out_dtype),
        grid_spec=grid_spec,
        compiler_params=compiler_params,
        cost_estimate=cost,
    )(x2d, w1c, b1_2d, w2c, b2_2d)

    return out2d.reshape(B, N, C_out)


def reference_mlp(x, w1, b1, w2, b2, compute_dtype=jnp.bfloat16):
    # Same numerics as the kernel: bf16 operands, f32 accumulation, f32 GELU.
    xc = x.astype(compute_dtype)
    h = jnp.einsum("bnc,ch->bnh", xc, w1.astype(compute_dtype),
                   preferred_element_type=jnp.float32) + b1
    h = _gelu(h)
    o = jnp.einsum("bnh,ho->bno", h.astype(compute_dtype),
                   w2.astype(compute_dtype),
                   preferred_element_type=jnp.float32) + b2
    return o.astype(x.dtype)


if __name__ == "__main__":
    # Small shapes consistent with the module: batch=2, seq=8,
    # inputs_dim=128, hidden_dim=256, outputs_dim=128.
    B, N = 2, 8
    C_in, C_hid, C_out = 128, 256, 128

    key = jax.random.PRNGKey(0)
    kx, kw1, kb1, kw2, kb2 = jax.random.split(key, 5)

    x = jax.random.normal(kx, (B, N, C_in), dtype=jnp.float32)
    lim1 = 1.0 / jnp.sqrt(C_in)
    lim2 = 1.0 / jnp.sqrt(C_hid)
    # Deterministic parameter init (uniform like torch Linear default).
    w1 = jax.random.uniform(kw1, (C_in, C_hid), jnp.float32, -lim1, lim1)
    b1 = jax.random.uniform(kb1, (C_hid,), jnp.float32, -lim1, lim1)
    w2 = jax.random.uniform(kw2, (C_hid, C_out), jnp.float32, -lim2, lim2)
    b2 = jax.random.uniform(kb2, (C_out,), jnp.float32, -lim2, lim2)

    ref = reference_mlp(x, w1, b1, w2, b2)

    # Path 1: weights-resident (gk == 1), no accumulator scratch.
    out = jax.block_until_ready(mlp_forward(x, w1, b1, w2, b2))
    assert out.shape == (B, N, C_out)
    assert jnp.allclose(out, ref, atol=1e-2, rtol=1e-2), "resident path mismatch"

    # Path 2: chunked hidden dim (gk > 1) with the f32 VMEM accumulator and
    # multiple row tiles — exercises the reduction kernel at small shapes.
    out2 = jax.block_until_ready(
        mlp_forward(x, w1, b1, w2, b2, tm=8, tk=128, weights_resident=False))
    assert jnp.allclose(out2, ref, atol=1e-2, rtol=1e-2), "chunked path mismatch"

    print("KERNEL_OK")
</pallas_src>

<mosaic_0001>
module attributes {stable_mosaic.version = 11 : i64} {
  func.func @_mlp_kernel_resident(%arg0: i32, %arg1: memref<16x128xbf16, #tpu.memory_space<vmem>>, %arg2: memref<128x256xbf16, #tpu.memory_space<vmem>>, %arg3: memref<1x256xf32, #tpu.memory_space<vmem>>, %arg4: memref<256x128xbf16, #tpu.memory_space<vmem>>, %arg5: memref<1x128xf32, #tpu.memory_space<vmem>>, %arg6: memref<16x128xf32, #tpu.memory_space<vmem>>) attributes {dimension_semantics = [#tpu.dimension_semantics<parallel>], iteration_bounds = array<i64: 1>, scalar_prefetch = 0 : i64, scratch_operands = 0 : i64, tpu.core_type = #tpu.core_type<tc>, window_params = [{transform_indices = @transform_0, window_bounds = array<i64: 16, 128>}, {pipeline_mode = #tpu.pipeline_mode<synchronous>, transform_indices = @transform_1, window_bounds = array<i64: 128, 256>}, {pipeline_mode = #tpu.pipeline_mode<synchronous>, transform_indices = @transform_2, window_bounds = array<i64: 1, 256>}, {pipeline_mode = #tpu.pipeline_mode<synchronous>, transform_indices = @transform_3, window_bounds = array<i64: 256, 128>}, {pipeline_mode = #tpu.pipeline_mode<synchronous>, transform_indices = @transform_4, window_bounds = array<i64: 1, 128>}, {transform_indices = @transform_5, window_bounds = array<i64: 16, 128>}]} {
    %c0 = arith.constant 0 : index
    %c0_0 = arith.constant 0 : index
    %0 = vector.load %arg1[%c0, %c0_0] : memref<16x128xbf16, #tpu.memory_space<vmem>>, vector<16x128xbf16>
    %c0_1 = arith.constant 0 : index
    %c0_2 = arith.constant 0 : index
    %1 = vector.load %arg2[%c0_1, %c0_2] : memref<128x256xbf16, #tpu.memory_space<vmem>>, vector<128x256xbf16>
    %cst = arith.constant dense<0.000000e+00> : vector<16x256xf32>
    %2 = tpu.matmul %0, %1, %cst {dimension_numbers = #tpu.dot_dimension_numbers<[1], [0], [0], [1], [0, 0, 1, 1], [], []>} : vector<16x128xbf16>, vector<128x256xbf16>, vector<16x256xf32> -> vector<16x256xf32>
    %c0_3 = arith.constant 0 : index
    %c0_4 = arith.constant 0 : index
    %3 = vector.load %arg3[%c0_3, %c0_4] : memref<1x256xf32, #tpu.memory_space<vmem>>, vector<1x256xf32>
    %4 = vector.broadcast %3 : vector<1x256xf32> to vector<16x256xf32>
    %5 = arith.addf %2, %4 : vector<16x256xf32>
    %cst_5 = arith.constant 5.000000e-01 : f32
    %6 = vector.broadcast %cst_5 : f32 to vector<16x256xf32>
    %7 = arith.mulf %6, %5 : vector<16x256xf32>
    %cst_6 = arith.constant 0.707106769 : f32
    %8 = vector.broadcast %cst_6 : f32 to vector<16x256xf32>
    %9 = arith.mulf %5, %8 : vector<16x256xf32>
    %10 = math.erf %9 : vector<16x256xf32>
    %cst_7 = arith.constant 1.000000e+00 : f32
    %11 = vector.broadcast %cst_7 : f32 to vector<16x256xf32>
    %12 = arith.addf %11, %10 : vector<16x256xf32>
    %13 = arith.mulf %7, %12 : vector<16x256xf32>
    %14 = arith.truncf %13 : vector<16x256xf32> to vector<16x256xbf16>
    %c0_8 = arith.constant 0 : index
    %c0_9 = arith.constant 0 : index
    %15 = vector.load %arg4[%c0_8, %c0_9] : memref<256x128xbf16, #tpu.memory_space<vmem>>, vector<256x128xbf16>
    %cst_10 = arith.constant dense<0.000000e+00> : vector<16x128xf32>
    %16 = tpu.matmul %14, %15, %cst_10 {dimension_numbers = #tpu.dot_dimension_numbers<[1], [0], [0], [1], [0, 0, 1, 1], [], []>} : vector<16x256xbf16>, vector<256x128xbf16>, vector<16x128xf32> -> vector<16x128xf32>
    %c0_11 = arith.constant 0 : index
    %c0_12 = arith.constant 0 : index
    %17 = vector.load %arg5[%c0_11, %c0_12] : memref<1x128xf32, #tpu.memory_space<vmem>>, vector<1x128xf32>
    %18 = vector.broadcast %17 : vector<1x128xf32> to vector<16x128xf32>
    %19 = arith.addf %16, %18 : vector<16x128xf32>
    %c0_13 = arith.constant 0 : index
    %c0_14 = arith.constant 0 : index
    %20 = vector.load %arg6[%c0_13, %c0_14] : memref<16x128xf32, #tpu.memory_space<vmem>>, vector<16x128xf32>
    tpu.vector_store %arg6[%c0_13, %c0_14], %19 {strides = array<i32>} : memref<16x128xf32, #tpu.memory_space<vmem>>, vector<16x128xf32>,
    return
  }
  func.func @transform_0(%arg0: i32) -> (i32, i32) {
    %c0_i32 = arith.constant 0 : i32
    %c0_i32_0 = arith.constant 0 : i32
    return %arg0, %c0_i32 : i32, i32
  }
  func.func @transform_1(%arg0: i32) -> (i32, i32) {
    %c0_i32 = arith.constant 0 : i32
    %c0_i32_0 = arith.constant 0 : i32
    %c0_i32_1 = arith.constant 0 : i32
    return %c0_i32, %c0_i32_0 : i32, i32
  }
  func.func @transform_2(%arg0: i32) -> (i32, i32) {
    %c0_i32 = arith.constant 0 : i32
    %c0_i32_0 = arith.constant 0 : i32
    %c0_i32_1 = arith.constant 0 : i32
    return %c0_i32, %c0_i32_0 : i32, i32
  }
  func.func @transform_3(%arg0: i32) -> (i32, i32) {
    %c0_i32 = arith.constant 0 : i32
    %c0_i32_0 = arith.constant 0 : i32
    %c0_i32_1 = arith.constant 0 : i32
    return %c0_i32, %c0_i32_0 : i32, i32
  }
  func.func @transform_4(%arg0: i32) -> (i32, i32) {
    %c0_i32 = arith.constant 0 : i32
    %c0_i32_0 = arith.constant 0 : i32
    %c0_i32_1 = arith.constant 0 : i32
    return %c0_i32, %c0_i32_0 : i32, i32
  }
  func.func @transform_5(%arg0: i32) -> (i32, i32) {
    %c0_i32 = arith.constant 0 : i32
    %c0_i32_0 = arith.constant 0 : i32
    return %arg0, %c0_i32 : i32, i32
  }
}

</mosaic_0001>

<llo_original>
// kernel: mlp_forward.1
$region0: #{mlp_forward.1}
  #allocation0 [shape = 'u32[]', space=smem, size = 0x4, offset = 0x4, fixed_abs, tag = 'smem constant byte address 0x4 - core index']
  #allocation1 [shape = 'u32[144,128]{1,0:T(1,128)}', space=vmem, size = 0x12000, scoped, tag = 'internal scratch']
  %s0 = inlined_call_operand.vmem [shape: bf16[16,128], index: 0, kind: input, shape index: {}]
  %s1 = inlined_call_operand.vmem [shape: bf16[128,256], index: 1, kind: input, shape index: {}]
  %s2 = inlined_call_operand.vmem [shape: f32[1,256], index: 2, kind: input, shape index: {}]
  %s3 = inlined_call_operand.vmem [shape: bf16[256,128], index: 3, kind: input, shape index: {}]
  %s4 = inlined_call_operand.vmem [shape: f32[1,128], index: 4, kind: input, shape index: {}]
  %s5 = inlined_call_operand.hbm [shape: f32[16,128], index: 5, kind: output, shape index: {}]
  %s6 = sld [smem:[#allocation0]]
  $region30: #{mlp_forward.1} parent=0
    _
  %s8 = ssub.s32 1, %s6
  %s9 = scalar_select 0, %s8, %s6
  $region1: #{mlp_forward.1} parent=0
    #allocation2 [shape = 'u8[8192]{0}', space=vmem, size = 0x2000, scoped, tag = 'output window, operand 0, single buffered']
    #allocation3 [shape = 's32[1]{0}', space=sflag, size = 0x4, scoped, tag = 'scoped memory for mlp_forward.1']
    %10 = vsyncpa [#allocation3], 0
    // Predicated region
    $region2: #{mlp_forward.1} parent=1 // pred_check
      _
    $region3: #{mlp_forward.1} parent=1 // pred_check_branch
      %12 = sbr.rel (0) target = $region5
    $region4: #{mlp_forward.1} parent=1 // pred_region
      _
    $region5: #{mlp_forward.1} parent=1 // pred_fallthru
      _
    // Predicated region
    $region6: #{mlp_forward.1} parent=1 // pred_check
      _
    $region7: #{mlp_forward.1} parent=1 // pred_check_branch
      %14 = sbr.rel (0) target = $region9
    $region8: #{mlp_forward.1} parent=1 // pred_region
      _
    $region9: #{mlp_forward.1} parent=1 // pred_fallthru
      _
    // Predicated region
    $region10: #{mlp_forward.1} parent=1 // pred_check
      _
    $region11: #{mlp_forward.1} parent=1 // pred_check_branch
      %16 = sbr.rel (0) target = $region13
    $region12: #{mlp_forward.1} parent=1 // pred_region
      _
    $region13: #{mlp_forward.1} parent=1 // pred_fallthru
      _
    // Predicated region
    $region14: #{mlp_forward.1} parent=1 // pred_check
      _
    $region15: #{mlp_forward.1} parent=1 // pred_check_branch
      %18 = sbr.rel (0) target = $region17
    $region16: #{mlp_forward.1} parent=1 // pred_region
      _
    $region17: #{mlp_forward.1} parent=1 // pred_fallthru
      _
    // Predicated region
    $region18: #{mlp_forward.1} parent=1 // pred_check
      _
    $region19: #{mlp_forward.1} parent=1 // pred_check_branch
      %20 = sbr.rel (0) target = $region21
    $region20: #{mlp_forward.1} parent=1 // pred_region
      _
    $region21: #{mlp_forward.1} parent=1 // pred_fallthru
      _
    %v22 = vld [vmem:[%s0] sm:$0xf]
    %v23 = vld [vmem:[%s0 + $0x4] sm:$0xf]
    %v24 = vld [vmem:[%s1] sm:$0xff]
    %v25 = vld [vmem:[%s1 + $0x8] sm:$0xff]
    %v26 = vld [vmem:[%s1 + $0x10] sm:$0xff]
    %v27 = vld [vmem:[%s1 + $0x18] sm:$0xff]
    %v28 = vld [vmem:[%s1 + $0x20] sm:$0xff]
    %v29 = vld [vmem:[%s1 + $0x28] sm:$0xff]
    %v30 = vld [vmem:[%s1 + $0x30] sm:$0xff]
    %v31 = vld [vmem:[%s1 + $0x38] sm:$0xff]
    %v32 = vld [vmem:[%s1 + $0x40] sm:$0xff]
    %v33 = vld [vmem:[%s1 + $0x48] sm:$0xff]
    %v34 = vld [vmem:[%s1 + $0x50] sm:$0xff]
    %v35 = vld [vmem:[%s1 + $0x58] sm:$0xff]
    %v36 = vld [vmem:[%s1 + $0x60] sm:$0xff]
    %v37 = vld [vmem:[%s1 + $0x68] sm:$0xff]
    %v38 = vld [vmem:[%s1 + $0x70] sm:$0xff]
    %v39 = vld [vmem:[%s1 + $0x78] sm:$0xff]
    %v40 = vld [vmem:[%s2] sm:$0x3]
    %v42 = vlaneseq
    %v43 = vshrl.u32 %v42, 7
    %v44 = vsub.s32 0, %v43
    %v45 = vrot.slane %v40, %v44
    %v46 = vlaneseq
    %v47 = vshrl.u32 %v46, 7
    %v48 = vsub.s32 1, %v47
    %v49 = vrot.slane %v40, %v48
    %v54 = vunpack.c.l.b16 %v22
    %v55 = vunpack.c.l.b16 %v23
    %v56 = vpack.c.b16 %v55, %v54
    %v74 = vunpack.c.l.b16 %v24
    %v75 = vunpack.c.h.b16 %v24
    %v76 = vunpack.c.l.b16 %v25
    %v77 = vunpack.c.h.b16 %v25
    %v78 = vunpack.c.l.b16 %v26
    %v79 = vunpack.c.h.b16 %v26
    %v80 = vunpack.c.l.b16 %v27
    %v81 = vunpack.c.h.b16 %v27
    %v82 = vunpack.c.l.b16 %v28
    %v83 = vunpack.c.h.b16 %v28
    %v84 = vunpack.c.l.b16 %v29
    %v85 = vunpack.c.h.b16 %v29
    %v86 = vunpack.c.l.b16 %v30
    %v87 = vunpack.c.h.b16 %v30
    %v88 = vunpack.c.l.b16 %v31
    %v89 = vunpack.c.h.b16 %v31
    %v90 = vunpack.c.l.b16 %v32
    %v91 = vunpack.c.h.b16 %v32
    %v92 = vunpack.c.l.b16 %v33
    %v93 = vunpack.c.h.b16 %v33
    %v94 = vunpack.c.l.b16 %v34
    %v95 = vunpack.c.h.b16 %v34
    %v96 = vunpack.c.l.b16 %v35
    %v97 = vunpack.c.h.b16 %v35
    %v98 = vunpack.c.l.b16 %v36
    %v99 = vunpack.c.h.b16 %v36
    %v100 = vunpack.c.l.b16 %v37
    %v101 = vunpack.c.h.b16 %v37
    %v102 = vunpack.c.l.b16 %v38
    %v103 = vunpack.c.h.b16 %v38
    %v104 = vunpack.c.l.b16 %v39
    %v105 = vunpack.c.h.b16 %v39
    %v106 = vpack.c.b16 %v76, %v74
    %v107 = vpack.c.b16 %v77, %v75
    %v108 = vpack.c.b16 %v80, %v78
    %v109 = vpack.c.b16 %v81, %v79
    %v110 = vpack.c.b16 %v84, %v82
    %v111 = vpack.c.b16 %v85, %v83
    %v112 = vpack.c.b16 %v88, %v86
    %v113 = vpack.c.b16 %v89, %v87
    %v114 = vpack.c.b16 %v92, %v90
    %v115 = vpack.c.b16 %v93, %v91
    %v116 = vpack.c.b16 %v96, %v94
    %v117 = vpack.c.b16 %v97, %v95
    %v118 = vpack.c.b16 %v100, %v98
    %v119 = vpack.c.b16 %v101, %v99
    %v120 = vpack.c.b16 %v104, %v102
    %v121 = vpack.c.b16 %v105, %v103
    %138 = vmatprep.subr.bf16.mxu0 %v107
    %139 = vmatpush1.bf16.msra.mxu0 %v106
    %140 = vmatprep.subr.bf16.mxu0 %v109
    %141 = vmatpush1.bf16.msra.mxu0 %v108
    %142 = vmatprep.subr.bf16.mxu0 %v111
    %143 = vmatpush1.bf16.msra.mxu0 %v110
    %144 = vmatprep.subr.bf16.mxu0 %v113
    %145 = vmatpush1.bf16.msra.mxu0 %v112
    %146 = vmatprep.subr.bf16.mxu0 %v115
    %147 = vmatpush1.bf16.msra.mxu0 %v114
    %148 = vmatprep.subr.bf16.mxu0 %v117
    %149 = vmatpush1.bf16.msra.mxu0 %v116
    %150 = vmatprep.subr.bf16.mxu0 %v119
    %151 = vmatpush1.bf16.msra.mxu0 %v118
    %152 = vmatprep.subr.bf16.mxu0 %v121
    %153 = vmatpush1.bf16.msra.mxu0 %v120
    %154 = vmatprep.subr.bf16.mxu0 0
    %155 = vmatpush1.bf16.msra.mxu0 0
    %156 = vmatprep.subr.bf16.mxu0 0
    %157 = vmatpush1.bf16.msra.mxu0 0
    %158 = vmatprep.subr.bf16.mxu0 0
    %159 = vmatpush1.bf16.msra.mxu0 0
    %160 = vmatprep.subr.bf16.mxu0 0
    %161 = vmatpush1.bf16.msra.mxu0 0
    %162 = vmatprep.subr.bf16.mxu0 0
    %163 = vmatpush1.bf16.msra.mxu0 0
    %164 = vmatprep.subr.bf16.mxu0 0
    %165 = vmatpush1.bf16.msra.mxu0 0
    %166 = vmatprep.subr.bf16.mxu0 0
    %167 = vmatpush1.bf16.msra.mxu0 0
    %168 = vmatprep.subr.bf16.mxu0 0
    %169 = vmatpush1.bf16.msra.mxu0 0
    %170 = vmatprep.mubr.bf16.mxu0 0
    %171 = vmatmul.mubr.bf16.gmra.mrb[0].mxu0 %v56
    %v172 = vpop.f32.mrb[0].mxu0
    %v173 = vadd.f32 %v45, %v172
    %v174 = vpop.f32.mrb[0].mxu0
    %v175 = vadd.f32 %v49, %v174
    %v176 = vpop.f32.mrb[0].mxu0
    %v177 = vadd.f32 %v45, %v176
    %v178 = vpop.f32.mrb[0].mxu0
    %v179 = vadd.f32 %v49, %v178
    %180 = vdwg.mxu0
    %v181 = vmul.f32 %v173, 0.5
    %v182 = vmul.f32 %v175, 0.5
    %v183 = vmul.f32 %v177, 0.5
    %v184 = vmul.f32 %v179, 0.5
    %v185 = vmul.f32 %v173, 0.70710677
    %v186 = vmul.f32 %v175, 0.70710677
    %v187 = vmul.f32 %v177, 0.70710677
    %v188 = vmul.f32 %v179, 0.70710677
    %v189 = verf.f32.pop %v185
    %v190 = verf.f32.pop %v186
    %v191 = verf.f32.pop %v187
    %v192 = verf.f32.pop %v188
    %v193 = vadd.f32 %v189, 1.0
    %v194 = vadd.f32 %v190, 1.0
    %v195 = vadd.f32 %v191, 1.0
    %v196 = vadd.f32 %v192, 1.0
    %v197 = vmul.f32 %v181, %v193
    %v198 = vmul.f32 %v182, %v194
    %v199 = vmul.f32 %v183, %v195
    %v200 = vmul.f32 %v184, %v196
    %v201 = vpack.c.bf16 %v199, %v197
    %v202 = vpack.c.bf16 %v200, %v198
    %v203 = vld [vmem:[%s3] sm:$0xf]
    %v204 = vld [vmem:[%s3 + $0x4] sm:$0xf]
    %v205 = vld [vmem:[%s3 + $0x8] sm:$0xf]
    %v206 = vld [vmem:[%s3 + $0xc] sm:$0xf]
    %v207 = vld [vmem:[%s3 + $0x10] sm:$0xf]
    %v208 = vld [vmem:[%s3 + $0x14] sm:$0xf]
    %v209 = vld [vmem:[%s3 + $0x18] sm:$0xf]
    %v210 = vld [vmem:[%s3 + $0x1c] sm:$0xf]
    %v211 = vld [vmem:[%s3 + $0x20] sm:$0xf]
    %v212 = vld [vmem:[%s3 + $0x24] sm:$0xf]
    %v213 = vld [vmem:[%s3 + $0x28] sm:$0xf]
    %v214 = vld [vmem:[%s3 + $0x2c] sm:$0xf]
    %v215 = vld [vmem:[%s3 + $0x30] sm:$0xf]
    %v216 = vld [vmem:[%s3 + $0x34] sm:$0xf]
    %v217 = vld [vmem:[%s3 + $0x38] sm:$0xf]
    %v218 = vld [vmem:[%s3 + $0x3c] sm:$0xf]
    %v219 = vld [vmem:[%s3 + $0x40] sm:$0xf]
    %v220 = vld [vmem:[%s3 + $0x44] sm:$0xf]
    %v221 = vld [vmem:[%s3 + $0x48] sm:$0xf]
    %v222 = vld [vmem:[%s3 + $0x4c] sm:$0xf]
    %v223 = vld [vmem:[%s3 + $0x50] sm:$0xf]
    %v224 = vld [vmem:[%s3 + $0x54] sm:$0xf]
    %v225 = vld [vmem:[%s3 + $0x58] sm:$0xf]
    %v226 = vld [vmem:[%s3 + $0x5c] sm:$0xf]
    %v227 = vld [vmem:[%s3 + $0x60] sm:$0xf]
    %v228 = vld [vmem:[%s3 + $0x64] sm:$0xf]
    %v229 = vld [vmem:[%s3 + $0x68] sm:$0xf]
    %v230 = vld [vmem:[%s3 + $0x6c] sm:$0xf]
    %v231 = vld [vmem:[%s3 + $0x70] sm:$0xf]
    %v232 = vld [vmem:[%s3 + $0x74] sm:$0xf]
    %v233 = vld [vmem:[%s3 + $0x78] sm:$0xf]
    %v234 = vld [vmem:[%s3 + $0x7c] sm:$0xf]
    %v235 = vld [vmem:[%s4] sm:$0x1]
    %v237 = vlaneseq
    %v238 = vshrl.u32 %v237, 7
    %v239 = vsub.s32 0, %v238
    %v240 = vrot.slane %v235, %v239
    %v274 = vunpack.c.l.b16 %v203
    %v275 = vunpack.c.l.b16 %v204
    %v276 = vunpack.c.l.b16 %v205
    %v277 = vunpack.c.l.b16 %v206
    %v278 = vunpack.c.l.b16 %v207
    %v279 = vunpack.c.l.b16 %v208
    %v280 = vunpack.c.l.b16 %v209
    %v281 = vunpack.c.l.b16 %v210
    %v282 = vunpack.c.l.b16 %v211
    %v283 = vunpack.c.l.b16 %v212
    %v284 = vunpack.c.l.b16 %v213
    %v285 = vunpack.c.l.b16 %v214
    %v286 = vunpack.c.l.b16 %v215
    %v287 = vunpack.c.l.b16 %v216
    %v288 = vunpack.c.l.b16 %v217
    %v289 = vunpack.c.l.b16 %v218
    %v290 = vunpack.c.l.b16 %v219
    %v291 = vunpack.c.l.b16 %v220
    %v292 = vunpack.c.l.b16 %v221
    %v293 = vunpack.c.l.b16 %v222
    %v294 = vunpack.c.l.b16 %v223
    %v295 = vunpack.c.l.b16 %v224
    %v296 = vunpack.c.l.b16 %v225
    %v297 = vunpack.c.l.b16 %v226
    %v298 = vunpack.c.l.b16 %v227
    %v299 = vunpack.c.l.b16 %v228
    %v300 = vunpack.c.l.b16 %v229
    %v301 = vunpack.c.l.b16 %v230
    %v302 = vunpack.c.l.b16 %v231
    %v303 = vunpack.c.l.b16 %v232
    %v304 = vunpack.c.l.b16 %v233
    %v305 = vunpack.c.l.b16 %v234
    %v306 = vpack.c.b16 %v275, %v274
    %v307 = vpack.c.b16 %v277, %v276
    %v308 = vpack.c.b16 %v279, %v278
    %v309 = vpack.c.b16 %v281, %v280
    %v310 = vpack.c.b16 %v283, %v282
    %v311 = vpack.c.b16 %v285, %v284
    %v312 = vpack.c.b16 %v287, %v286
    %v313 = vpack.c.b16 %v289, %v288
    %v314 = vpack.c.b16 %v291, %v290
    %v315 = vpack.c.b16 %v293, %v292
    %v316 = vpack.c.b16 %v295, %v294
    %v317 = vpack.c.b16 %v297, %v296
    %v318 = vpack.c.b16 %v299, %v298
    %v319 = vpack.c.b16 %v301, %v300
    %v320 = vpack.c.b16 %v303, %v302
    %v321 = vpack.c.b16 %v305, %v304
    %338 = vmatprep.subr.bf16.mxu0 0
    %339 = vmatpush1.bf16.msra.mxu0 %v306
    %340 = vmatprep.subr.bf16.mxu0 0
    %341 = vmatpush1.bf16.msra.mxu0 %v307
    %342 = vmatprep.subr.bf16.mxu0 0
    %343 = vmatpush1.bf16.msra.mxu0 %v308
    %344 = vmatprep.subr.bf16.mxu0 0
    %345 = vmatpush1.bf16.msra.mxu0 %v309
    %346 = vmatprep.subr.bf16.mxu0 0
    %347 = vmatpush1.bf16.msra.mxu0 %v310
    %348 = vmatprep.subr.bf16.mxu0 0
    %349 = vmatpush1.bf16.msra.mxu0 %v311
    %350 = vmatprep.subr.bf16.mxu0 0
    %351 = vmatpush1.bf16.msra.mxu0 %v312
    %352 = vmatprep.subr.bf16.mxu0 0
    %353 = vmatpush1.bf16.msra.mxu0 %v313
    %354 = vmatprep.subr.bf16.mxu0 0
    %355 = vmatpush1.bf16.msra.mxu0 %v314
    %356 = vmatprep.subr.bf16.mxu0 0
    %357 = vmatpush1.bf16.msra.mxu0 %v315
    %358 = vmatprep.subr.bf16.mxu0 0
    %359 = vmatpush1.bf16.msra.mxu0 %v316
    %360 = vmatprep.subr.bf16.mxu0 0
    %361 = vmatpush1.bf16.msra.mxu0 %v317
    %362 = vmatprep.subr.bf16.mxu0 0
    %363 = vmatpush1.bf16.msra.mxu0 %v318
    %364 = vmatprep.subr.bf16.mxu0 0
    %365 = vmatpush1.bf16.msra.mxu0 %v319
    %366 = vmatprep.subr.bf16.mxu0 0
    %367 = vmatpush1.bf16.msra.mxu0 %v320
    %368 = vmatprep.subr.bf16.mxu0 0
    %369 = vmatpush1.bf16.msra.mxu0 %v321
    %370 = vmatprep.mubr.bf16.mxu0 %v202
    %371 = vmatmul.mubr.bf16.gmra.mrb[0].mxu0 %v201
    %v372 = vpop.f32.mrb[0].mxu0
    %v373 = vadd.f32 %v240, %v372
    %v374 = vpop.f32.mrb[0].mxu0
    %v375 = vpop.f32.mrb[0].mxu0
    %v376 = vadd.f32 %v240, %v375
    %v377 = vpop.f32.mrb[0].mxu0
    %378 = vdwg.mxu0
    %379 = vst [vmem:[#allocation2] sm:$0xff] %v373
    %380 = vst [vmem:[#allocation2 + $0x8] sm:$0xff] %v376
    // Predicated region
    $region22: #{mlp_forward.1} parent=1 // pred_check
      _
    $region23: #{mlp_forward.1} parent=1 // pred_check_branch
      %382 = sbr.rel (0) target = $region25
    $region24: #{mlp_forward.1} parent=1 // pred_region
      %s384 = ssub.s32 256, 256
      %385 = vsyncadd [#allocation3], %s384
      %s386 = sshll.u32 [#allocation2], 4
      %s387 = int_to_ptr.vmem [resolvable:$true] %s386
      %392 = dma.vmem_to_hbm [thread:$0]  %s387, 256, %s5, [#allocation3], 128, 128, 8
    $region25: #{mlp_forward.1} parent=1 // pred_fallthru
      _
    // Predicated region
    $region26: #{mlp_forward.1} parent=1 // pred_check
      _
    $region27: #{mlp_forward.1} parent=1 // pred_check_branch
      %394 = sbr.rel (0) target = $region29
    $region28: #{mlp_forward.1} parent=1 // pred_region
      %395 = dma.done [#allocation3], 256
    $region29: #{mlp_forward.1} parent=1 // pred_fallthru
      _
    %396 = vsyncpa [#allocation3], 1

</llo_original>
